<compile_context>
chip_gen: v6e
topology: v6e:2x2x1
jax: 0.10.0
libtpu: 0.0.40
codegen_flags: <defaults>
</compile_context>

<pallas_src>
import jax
import jax.numpy as jnp
from jax.experimental import pallas as pl
from jax.experimental.pallas import tpu as pltpu


def _round_up(n, m):
    return ((n + m - 1) // m) * m


def _choose_tiling(n):
    """Pick (TQ, NP): tile width (lanes over queries) and padded extent."""
    if n <= 4096:
        # One tile covers everything: this kernel is launch/per-step-overhead
        # bound, so fewer grid steps is the biggest lever.
        tq = _round_up(max(n, 8), 8)
    else:
        # >= 2 lane-multiple tiles: lets v7x's 2 TensorCores both get work via
        # the "parallel" grid axis; cap tile size to keep VMEM use modest.
        tq = min(8192, _round_up(-(-n // 2), 128))
    return tq, _round_up(n, tq)


def _scores_labels_math(lgT):
    """lgT: (C1, TQ) f32 — classes on sublanes (last row = no-object class),
    queries lane-dense.  Returns a (2, TQ) f32 slab:
      row 0 = best kept-class softmax prob, row 1 = argmax label (i32 bits)."""
    kept = lgT[:-1, :]                                       # drop no-object class
    kept_max = jnp.max(kept, axis=0, keepdims=True)          # (1, TQ)
    m_all = jnp.maximum(kept_max, lgT[-1:, :])               # softmax max (all classes)
    denom = jnp.sum(jnp.exp(lgT - m_all), axis=0, keepdims=True)   # (1, TQ)

    # First-index argmax on the RAW kept logits (torch.max-style tie-break).
    # Sentinel = number of kept classes, which is >= any valid index (<= C1-2).
    iota = jax.lax.broadcasted_iota(jnp.int32, kept.shape, 0)
    labels = jnp.min(
        jnp.where(kept == kept_max, iota, jnp.int32(kept.shape[0])),
        axis=0, keepdims=True)                               # (1, TQ) i32

    # score = softmax prob of the best kept class; one exact reciprocal/query.
    scores = jnp.exp(kept_max - m_all) * pl.reciprocal(denom, approx=False)

    # Fuse scores + labels into one lane-dense slab (one output DMA).
    return jnp.concatenate([scores, pltpu.bitcast(labels, jnp.float32)], axis=0)


def _kernel_natural(logits_ref, out_ref):
    # logits_ref block: (TQ, C1) natural layout.  Flip on the XLU so all
    # compute and the fused store run lane-dense over queries.
    out_ref[...] = _scores_labels_math(jnp.transpose(logits_ref[...], (1, 0)))


def _kernel_pretransposed(logitsT_ref, out_ref):
    # logitsT_ref block: (C1, TQ), already classes-major (fallback path).
    out_ref[...] = _scores_labels_math(logitsT_ref[...])


def _run_scores_labels(pred_logits):
    """pred_logits [B, Q, C+1] f32 -> (scores [B,Q] f32, labels [B,Q] i32)."""
    B, Q, C1 = pred_logits.shape
    N = B * Q
    TQ, NP = _choose_tiling(N)
    grid = NP // TQ

    out_shape = jax.ShapeDtypeStruct((2, NP), jnp.float32)
    out_spec = pl.BlockSpec((2, TQ), lambda i: (0, i))
    cparams = pltpu.CompilerParams(dimension_semantics=("parallel",))

    # Collapsing reshape [B,Q,C1] -> [N,C1] is layout-preserving (no HBM copy).
    lg2d = pred_logits.reshape(N, C1)
    try:
        fused = pl.pallas_call(
            _kernel_natural,
            out_shape=out_shape,
            grid_spec=pltpu.PrefetchScalarGridSpec(
                num_scalar_prefetch=0,
                grid=(grid,),
                in_specs=[pl.BlockSpec((TQ, C1), lambda i: (i, 0))],
                out_specs=out_spec,
            ),
            compiler_params=cparams,
        )(lg2d)
    except Exception:
        # Portability fallback: if the in-kernel (TQ,C1)->(C1,TQ) flip fails to
        # lower, pre-transpose in XLA (one extra HBM round trip of the logits).
        lgT = jnp.transpose(pred_logits, (2, 0, 1)).reshape(C1, N)
        if NP != N:
            lgT = jnp.pad(lgT, ((0, 0), (0, NP - N)))
        fused = pl.pallas_call(
            _kernel_pretransposed,
            out_shape=out_shape,
            grid_spec=pltpu.PrefetchScalarGridSpec(
                num_scalar_prefetch=0,
                grid=(grid,),
                in_specs=[pl.BlockSpec((C1, TQ), lambda i: (0, i))],
                out_specs=out_spec,
            ),
            compiler_params=cparams,
        )(lgT)

    scores = fused[0, :N].reshape(B, Q)
    labels = jax.lax.bitcast_convert_type(fused[1, :N], jnp.int32).reshape(B, Q)
    return scores, labels


def postprocess(pred_logits, pred_boxes, sizes):
    """pred_logits [B,Q,C+1] f32, pred_boxes [B,Q,6] f32, sizes [B,3] (d,h,w) i32."""
    B, Q, _ = pred_logits.shape
    assert pred_boxes.shape == (B, Q, 6)

    scores, labels = _run_scores_labels(pred_logits)

    # Box conversion + per-image scaling: trivial elementwise work, left to XLA.
    ctr, sz = pred_boxes[..., :3], pred_boxes[..., 3:]
    xyzxyz = jnp.concatenate([ctr - 0.5 * sz, ctr + 0.5 * sz], axis=-1)  # (B, Q, 6)
    sizes_f = sizes.astype(jnp.float32)
    scale = sizes_f[:, jnp.array([2, 1, 0, 2, 1, 0])][:, None, :]        # [w,h,d,w,h,d]
    boxes = xyzxyz * scale

    return scores, labels, boxes


def postprocess_reference(pred_logits, pred_boxes, sizes):
    """Pure-JAX reference mirroring the PyTorch forward."""
    ctr, sz = pred_boxes[..., :3], pred_boxes[..., 3:]
    xyzxyz = jnp.concatenate([ctr - 0.5 * sz, ctr + 0.5 * sz], axis=-1)
    sizes_f = sizes.astype(jnp.float32)
    scale = sizes_f[:, jnp.array([2, 1, 0, 2, 1, 0])][:, None, :]
    boxes = xyzxyz * scale
    prob = jax.nn.softmax(pred_logits, axis=-1)
    scores = prob[..., :-1].max(-1)
    labels = prob[..., :-1].argmax(-1).astype(jnp.int32)
    return scores, labels, boxes


if __name__ == "__main__":
    B, Q, NUM_CLASSES = 2, 8, 7          # C+1 = 8 logits (last = no-object)
    key = jax.random.PRNGKey(0)
    k1, k2 = jax.random.split(key)

    pred_logits = jax.random.normal(k1, (B, Q, NUM_CLASSES + 1), dtype=jnp.float32)
    pred_boxes = jax.nn.sigmoid(
        jax.random.normal(k2, (B, Q, 6), dtype=jnp.float32))   # cxcyczwhd in [0,1]
    # targets[b]['size'] = (img_d, img_h, img_w)
    sizes = jnp.array([[16, 16, 16], [12, 20, 24]], dtype=jnp.int32)

    scores, labels, boxes = postprocess(pred_logits, pred_boxes, sizes)
    jax.block_until_ready((scores, labels, boxes))

    # verify against pure-JAX reference of the PyTorch forward
    r_scores, r_labels, r_boxes = postprocess_reference(pred_logits, pred_boxes, sizes)
    assert jnp.allclose(scores, r_scores, atol=1e-5), "scores mismatch"
    assert jnp.array_equal(labels, r_labels), "labels mismatch"
    assert jnp.allclose(boxes, r_boxes, atol=1e-5), "boxes mismatch"

    # assemble the per-image results list (Python glue, like the torch module)
    results = [{"scores": scores[b], "labels": labels[b], "boxes": boxes[b]}
               for b in range(B)]
    assert len(results) == B

    print("KERNEL_OK")
</pallas_src>

<mosaic_0001>
module attributes {stable_mosaic.version = 11 : i64} {
  func.func @_kernel_natural(%arg0: i32, %arg1: memref<16x8xf32, #tpu.memory_space<vmem>>, %arg2: memref<2x16xf32, #tpu.memory_space<vmem>>) attributes {dimension_semantics = [#tpu.dimension_semantics<parallel>], iteration_bounds = array<i64: 1>, scalar_prefetch = 0 : i64, scratch_operands = 0 : i64, tpu.core_type = #tpu.core_type<tc>, window_params = [{transform_indices = @transform_0, window_bounds = array<i64: 16, 8>}, {transform_indices = @transform_1, window_bounds = array<i64: 2, 16>}]} {
    %c0 = arith.constant 0 : index
    %c0_0 = arith.constant 0 : index
    %0 = vector.load %arg1[%c0, %c0_0] : memref<16x8xf32, #tpu.memory_space<vmem>>, vector<16x8xf32>
    %1 = tpu.transpose %0, [1, 0] : vector<16x8xf32> -> vector<8x16xf32>
    %2 = vector.extract_strided_slice %1 {offsets = [0, 0], sizes = [7, 16], strides = [1, 1]} : vector<8x16xf32> to vector<7x16xf32>
    %cst = arith.constant dense<0xFF800000> : vector<16xf32>
    %3 = vector.multi_reduction <maximumf>, %2, %cst [0] : vector<7x16xf32> to vector<16xf32>
    %4 = vector.shape_cast %3 : vector<16xf32> to vector<1x16xf32>
    %5 = vector.extract_strided_slice %1 {offsets = [7, 0], sizes = [1, 16], strides = [1, 1]} : vector<8x16xf32> to vector<1x16xf32>
    %6 = arith.maximumf %4, %5 : vector<1x16xf32>
    %7 = vector.broadcast %6 : vector<1x16xf32> to vector<8x16xf32>
    %8 = arith.subf %1, %7 : vector<8x16xf32>
    %9 = math.exp %8 : vector<8x16xf32>
    %cst_1 = arith.constant dense<0.000000e+00> : vector<16xf32>
    %10 = vector.multi_reduction <add>, %9, %cst_1 [0] : vector<8x16xf32> to vector<16xf32>
    %11 = vector.shape_cast %10 : vector<16xf32> to vector<1x16xf32>
    %12 = tpu.iota {dimensions = array<i32: 0>} : vector<7x16xi32>
    %13 = vector.broadcast %4 : vector<1x16xf32> to vector<7x16xf32>
    %14 = arith.cmpf oeq, %2, %13 : vector<7x16xf32>
    %c7_i32 = arith.constant 7 : i32
    %15 = vector.broadcast %c7_i32 : i32 to vector<7x16xi32>
    %16 = arith.select %14, %12, %15 : vector<7x16xi1>, vector<7x16xi32>
    %cst_2 = arith.constant dense<2147483647> : vector<16xi32>
    %17 = vector.multi_reduction <minsi>, %16, %cst_2 [0] : vector<7x16xi32> to vector<16xi32>
    %18 = vector.shape_cast %17 : vector<16xi32> to vector<1x16xi32>
    %19 = arith.subf %4, %6 : vector<1x16xf32>
    %20 = math.exp %19 : vector<1x16xf32>
    %21 = tpu.reciprocal %11 : vector<1x16xf32> -> vector<1x16xf32>
    %22 = arith.mulf %20, %21 : vector<1x16xf32>
    %23 = tpu.bitcast %18 : vector<1x16xi32> -> vector<1x16xf32>
    %24 = tpu.concatenate %22, %23 in 0 : vector<1x16xf32>, vector<1x16xf32> -> vector<2x16xf32>
    %c0_3 = arith.constant 0 : index
    %c0_4 = arith.constant 0 : index
    %25 = vector.load %arg2[%c0_3, %c0_4] : memref<2x16xf32, #tpu.memory_space<vmem>>, vector<2x16xf32>
    tpu.vector_store %arg2[%c0_3, %c0_4], %24 {strides = array<i32>} : memref<2x16xf32, #tpu.memory_space<vmem>>, vector<2x16xf32>,
    return
  }
  func.func @transform_0(%arg0: i32) -> (i32, i32) {
    %c0_i32 = arith.constant 0 : i32
    %c0_i32_0 = arith.constant 0 : i32
    return %arg0, %c0_i32 : i32, i32
  }
  func.func @transform_1(%arg0: i32) -> (i32, i32) {
    %c0_i32 = arith.constant 0 : i32
    %c0_i32_0 = arith.constant 0 : i32
    return %c0_i32, %arg0 : i32, i32
  }
}

module attributes {stable_mosaic.version = 11 : i64} {
  func.func @_kernel_pretransposed(%arg0: i32, %arg1: memref<8x16xf32, #tpu.memory_space<vmem>>, %arg2: memref<2x16xf32, #tpu.memory_space<vmem>>) attributes {dimension_semantics = [#tpu.dimension_semantics<parallel>], iteration_bounds = array<i64: 1>, scalar_prefetch = 0 : i64, scratch_operands = 0 : i64, tpu.core_type = #tpu.core_type<tc>, window_params = [{transform_indices = @transform_0, window_bounds = array<i64: 8, 16>}, {transform_indices = @transform_1, window_bounds = array<i64: 2, 16>}]} {
    %c0 = arith.constant 0 : index
    %c0_0 = arith.constant 0 : index
    %0 = vector.load %arg1[%c0, %c0_0] : memref<8x16xf32, #tpu.memory_space<vmem>>, vector<8x16xf32>
    %1 = vector.extract_strided_slice %0 {offsets = [0, 0], sizes = [7, 16], strides = [1, 1]} : vector<8x16xf32> to vector<7x16xf32>
    %cst = arith.constant dense<0xFF800000> : vector<16xf32>
    %2 = vector.multi_reduction <maximumf>, %1, %cst [0] : vector<7x16xf32> to vector<16xf32>
    %3 = vector.shape_cast %2 : vector<16xf32> to vector<1x16xf32>
    %4 = vector.extract_strided_slice %0 {offsets = [7, 0], sizes = [1, 16], strides = [1, 1]} : vector<8x16xf32> to vector<1x16xf32>
    %5 = arith.maximumf %3, %4 : vector<1x16xf32>
    %6 = vector.broadcast %5 : vector<1x16xf32> to vector<8x16xf32>
    %7 = arith.subf %0, %6 : vector<8x16xf32>
    %8 = math.exp %7 : vector<8x16xf32>
    %cst_1 = arith.constant dense<0.000000e+00> : vector<16xf32>
    %9 = vector.multi_reduction <add>, %8, %cst_1 [0] : vector<8x16xf32> to vector<16xf32>
    %10 = vector.shape_cast %9 : vector<16xf32> to vector<1x16xf32>
    %11 = tpu.iota {dimensions = array<i32: 0>} : vector<7x16xi32>
    %12 = vector.broadcast %3 : vector<1x16xf32> to vector<7x16xf32>
    %13 = arith.cmpf oeq, %1, %12 : vector<7x16xf32>
    %c7_i32 = arith.constant 7 : i32
    %14 = vector.broadcast %c7_i32 : i32 to vector<7x16xi32>
    %15 = arith.select %13, %11, %14 : vector<7x16xi1>, vector<7x16xi32>
    %cst_2 = arith.constant dense<2147483647> : vector<16xi32>
    %16 = vector.multi_reduction <minsi>, %15, %cst_2 [0] : vector<7x16xi32> to vector<16xi32>
    %17 = vector.shape_cast %16 : vector<16xi32> to vector<1x16xi32>
    %18 = arith.subf %3, %5 : vector<1x16xf32>
    %19 = math.exp %18 : vector<1x16xf32>
    %20 = tpu.reciprocal %10 : vector<1x16xf32> -> vector<1x16xf32>
    %21 = arith.mulf %19, %20 : vector<1x16xf32>
    %22 = tpu.bitcast %17 : vector<1x16xi32> -> vector<1x16xf32>
    %23 = tpu.concatenate %21, %22 in 0 : vector<1x16xf32>, vector<1x16xf32> -> vector<2x16xf32>
    %c0_3 = arith.constant 0 : index
    %c0_4 = arith.constant 0 : index
    %24 = vector.load %arg2[%c0_3, %c0_4] : memref<2x16xf32, #tpu.memory_space<vmem>>, vector<2x16xf32>
    tpu.vector_store %arg2[%c0_3, %c0_4], %23 {strides = array<i32>} : memref<2x16xf32, #tpu.memory_space<vmem>>, vector<2x16xf32>,
    return
  }
  func.func @transform_0(%arg0: i32) -> (i32, i32) {
    %c0_i32 = arith.constant 0 : i32
    %c0_i32_0 = arith.constant 0 : i32
    return %c0_i32, %arg0 : i32, i32
  }
  func.func @transform_1(%arg0: i32) -> (i32, i32) {
    %c0_i32 = arith.constant 0 : i32
    %c0_i32_0 = arith.constant 0 : i32
    return %c0_i32, %arg0 : i32, i32
  }
}

</mosaic_0001>

<llo_original>
// kernel: tpu_custom_call.1
$region0: #{tpu_custom_call.1}
  #allocation0 [shape = 'u32[]', space=smem, size = 0x4, offset = 0x4, fixed_abs, tag = 'smem constant byte address 0x4 - core index']
  #allocation1 [shape = 'u32[144,128]{1,0:T(1,128)}', space=vmem, size = 0x12000, scoped, tag = 'internal scratch']
  %s0 = inlined_call_operand.vmem [shape: f32[16,8], index: 0, kind: input, shape index: {}]
  %s1 = inlined_call_operand.hbm [shape: f32[2,16], index: 1, kind: output, shape index: {}]
  %s2 = sld [smem:[#allocation0]]
  $region14: #{tpu_custom_call.1} parent=0
    _
  %s4 = ssub.s32 1, %s2
  %s5 = scalar_select 0, %s4, %s2
  $region1: #{tpu_custom_call.1} parent=0
    #allocation2 [shape = 'u8[1024]{0}', space=vmem, size = 0x400, scoped, tag = 'output window, operand 0, single buffered']
    #allocation3 [shape = 's32[1]{0}', space=sflag, size = 0x4, scoped, tag = 'scoped memory for tpu_custom_call.1']
    %6 = vsyncpa [#allocation3], 0
    // Predicated region
    $region2: #{tpu_custom_call.1} parent=1 // pred_check
      _
    $region3: #{tpu_custom_call.1} parent=1 // pred_check_branch
      %8 = sbr.rel (0) target = $region5
    $region4: #{tpu_custom_call.1} parent=1 // pred_region
      _
    $region5: #{tpu_custom_call.1} parent=1 // pred_fallthru
      _
    %v9 = vld [vmem:[%s0] sm:$0xff]
    %v10 = vld [vmem:[%s0 + $0x8] sm:$0xff]
    %11 = vxpose.xlu0.b32.start [1/16] %v9, 128
    %12 = vxpose.xlu0.b32.cont [2/16] %v10, 128
    %13 = vxpose.xlu0.b32.cont [3/16] 0.0, 128
    %14 = vxpose.xlu0.b32.cont [4/16] 0.0, 128
    %15 = vxpose.xlu0.b32.cont [5/16] 0.0, 128
    %16 = vxpose.xlu0.b32.cont [6/16] 0.0, 128
    %17 = vxpose.xlu0.b32.cont [7/16] 0.0, 128
    %18 = vxpose.xlu0.b32.cont [8/16] 0.0, 128
    %19 = vxpose.xlu0.b32.cont [9/16] 0.0, 128
    %20 = vxpose.xlu0.b32.cont [10/16] 0.0, 128
    %21 = vxpose.xlu0.b32.cont [11/16] 0.0, 128
    %22 = vxpose.xlu0.b32.cont [12/16] 0.0, 128
    %23 = vxpose.xlu0.b32.cont [13/16] 0.0, 128
    %24 = vxpose.xlu0.b32.cont [14/16] 0.0, 128
    %25 = vxpose.xlu0.b32.cont [15/16] 0.0, 128
    %26 = vxpose.xlu0.b32.end [16/16] 0.0, 128
    %v27 = vpop.trf.xlu0
    %v28 = vpop.trf.xlu0
    %v29 = vpop.trf.xlu0
    %v30 = vpop.trf.xlu0
    %v31 = vpop.trf.xlu0
    %v32 = vpop.trf.xlu0
    %v33 = vpop.trf.xlu0
    %v34 = vpop.trf.xlu0
    %v35 = vpop.trf.xlu0
    %v36 = vpop.trf.xlu0
    %v37 = vpop.trf.xlu0
    %v38 = vpop.trf.xlu0
    %v39 = vpop.trf.xlu0
    %v40 = vpop.trf.xlu0
    %v41 = vpop.trf.xlu0
    %v42 = vpop.trf.xlu0
    %vm43 = vcmask 129024
    %v44 = vsel %vm43, %v27, -inf
    %v45 = vrot.slane %v44, 4
    %v46 = vmax.f32 %v44, %v45
    %v47 = vrot.slane %v46, 2
    %v48 = vmax.f32 %v46, %v47
    %v49 = vrot.slane %v48, 1
    %v50 = vmax.f32 %v48, %v49
    %v51 = vmax.f32 %v50, %v27
    %v52 = vlaneseq
    %v53 = vshrl.u32 %v52, 7
    %v54 = vsub.s32 7, %v53
    %v55 = vrot.slane %v51, %v54
    %v56 = vsub.f32 %v27, %v55
    %v57 = vmul.f32 %v56, 1.442695
    %v58 = vpow.pop %v57
    %vm59 = vcmask 130048
    %v60 = vsel %vm59, %v58, 0.0
    %v61 = vrot.slane %v60, 4
    %v62 = vadd.f32 %v60, %v61
    %v63 = vrot.slane %v62, 2
    %v64 = vadd.f32 %v62, %v63
    %v65 = vrot.slane %v64, 1
    %v66 = vadd.f32 %v64, %v65
    %v67 = vlaneseq
    %v68 = vshrl.u32 %v67, 7
    %vm69 = vcmp.eq.f32.partialorder %v27, %v50
    %v70 = vsel %vm69, %v68, 7
    %v71 = vsel %vm43, %v70, 2147483647
    %v72 = vrot.slane %v71, 4
    %vm73 = vcmp.lt.s32.totalorder %v71, %v72
    %v74 = vsel %vm73, %v71, %v72
    %v75 = vrot.slane %v74, 2
    %vm76 = vcmp.lt.s32.totalorder %v74, %v75
    %v77 = vsel %vm76, %v74, %v75
    %v78 = vrot.slane %v77, 1
    %vm79 = vcmp.lt.s32.totalorder %v77, %v78
    %v80 = vsel %vm79, %v77, %v78
    %v81 = vsub.f32 %v50, %v51
    %v82 = vmul.f32 %v81, 1.442695
    %v83 = vpow.pop %v82
    %v84 = vrcp.pop %v66
    %v85 = vmul.f32 %v83, %v84
    %v88 = vrot.slane %v85, 7
    %vm90 = vcmask 1040384
    %v91 = vsel %vm90, %v88, %v80
    %vm92 = vcmask 123904
    %93 = vst.msk [vmem:[#allocation2] sm:$0x3] %vm92, %v91
    // Predicated region
    $region6: #{tpu_custom_call.1} parent=1 // pred_check
      _
    $region7: #{tpu_custom_call.1} parent=1 // pred_check_branch
      %95 = sbr.rel (0) target = $region9
    $region8: #{tpu_custom_call.1} parent=1 // pred_region
      %s97 = ssub.s32 32, 32
      %98 = vsyncadd [#allocation3], %s97
      %s100 = sshll.u32 [#allocation2], 4
      %s101 = int_to_ptr.vmem [resolvable:$true] %s100
      %103 = dma.vmem_to_hbm [thread:$0]  %s101, 32, %s1, [#allocation3]
    $region9: #{tpu_custom_call.1} parent=1 // pred_fallthru
      _
    // Predicated region
    $region10: #{tpu_custom_call.1} parent=1 // pred_check
      _
    $region11: #{tpu_custom_call.1} parent=1 // pred_check_branch
      %105 = sbr.rel (0) target = $region13
    $region12: #{tpu_custom_call.1} parent=1 // pred_region
      %106 = dma.done [#allocation3], 32
    $region13: #{tpu_custom_call.1} parent=1 // pred_fallthru
      _
    %107 = vsyncpa [#allocation3], 1

// kernel: tpu_custom_call.1
$region0: #{tpu_custom_call.1}
  #allocation0 [shape = 'u32[]', space=smem, size = 0x4, offset = 0x4, fixed_abs, tag = 'smem constant byte address 0x4 - core index']
  #allocation1 [shape = 'u32[144,128]{1,0:T(1,128)}', space=vmem, size = 0x12000, scoped, tag = 'internal scratch']
  %s0 = inlined_call_operand.hbm [shape: f32[8,16], index: 0, kind: input, shape index: {}]
  %s1 = inlined_call_operand.hbm [shape: f32[2,16], index: 1, kind: output, shape index: {}]
  %s2 = sld [smem:[#allocation0]]
  $region18: #{tpu_custom_call.1} parent=0
    _
  %s4 = ssub.s32 1, %s2
  %s5 = scalar_select 0, %s4, %s2
  $region1: #{tpu_custom_call.1} parent=0
    #allocation2 [shape = 'u8[4096]{0}', space=vmem, size = 0x1000, scoped, tag = 'input window, operand 0, single buffered']
    #allocation3 [shape = 's32[1]{0}', space=sflag, size = 0x4, scoped, tag = 'scoped memory for tpu_custom_call.1']
    #allocation4 [shape = 's32[1]{0}', space=sflag, size = 0x4, scoped, tag = 'scoped memory for tpu_custom_call.1']
    #allocation5 [shape = 'u8[1024]{0}', space=vmem, size = 0x400, scoped, tag = 'output window, operand 0, single buffered']
    %6 = vsyncpa [#allocation3], 0
    %7 = vsyncpa [#allocation4], 0
    // Predicated region
    $region2: #{tpu_custom_call.1} parent=1 // pred_check
      _
    $region3: #{tpu_custom_call.1} parent=1 // pred_check_branch
      %9 = sbr.rel (0) target = $region5
    $region4: #{tpu_custom_call.1} parent=1 // pred_region
      %s11 = ssub.s32 128, 128
      %12 = vsyncadd [#allocation3], %s11
      %s14 = sshll.u32 [#allocation2], 4
      %s15 = int_to_ptr.vmem [resolvable:$true] %s14
      %17 = dma.hbm_to_vmem [thread:$0]  %s0, 128, %s15, [#allocation3]
    $region5: #{tpu_custom_call.1} parent=1 // pred_fallthru
      _
    // Predicated region
    $region6: #{tpu_custom_call.1} parent=1 // pred_check
      _
    $region7: #{tpu_custom_call.1} parent=1 // pred_check_branch
      %19 = sbr.rel (0) target = $region9
    $region8: #{tpu_custom_call.1} parent=1 // pred_region
      %20 = dma.done [#allocation3], 128
    $region9: #{tpu_custom_call.1} parent=1 // pred_fallthru
      _
    %v21 = vld [vmem:[#allocation2] sm:$0xff]
    %vm22 = vcmask 129024
    %v23 = vsel %vm22, %v21, -inf
    %v24 = vrot.slane %v23, 4
    %v25 = vmax.f32 %v23, %v24
    %v26 = vrot.slane %v25, 2
    %v27 = vmax.f32 %v25, %v26
    %v28 = vrot.slane %v27, 1
    %v29 = vmax.f32 %v27, %v28
    %v30 = vmax.f32 %v29, %v21
    %v31 = vlaneseq
    %v32 = vshrl.u32 %v31, 7
    %v33 = vsub.s32 7, %v32
    %v34 = vrot.slane %v30, %v33
    %v35 = vsub.f32 %v21, %v34
    %v36 = vmul.f32 %v35, 1.442695
    %v37 = vpow.pop %v36
    %vm38 = vcmask 130048
    %v39 = vsel %vm38, %v37, 0.0
    %v40 = vrot.slane %v39, 4
    %v41 = vadd.f32 %v39, %v40
    %v42 = vrot.slane %v41, 2
    %v43 = vadd.f32 %v41, %v42
    %v44 = vrot.slane %v43, 1
    %v45 = vadd.f32 %v43, %v44
    %v46 = vlaneseq
    %v47 = vshrl.u32 %v46, 7
    %vm48 = vcmp.eq.f32.partialorder %v21, %v29
    %v49 = vsel %vm48, %v47, 7
    %v50 = vsel %vm22, %v49, 2147483647
    %v51 = vrot.slane %v50, 4
    %vm52 = vcmp.lt.s32.totalorder %v50, %v51
    %v53 = vsel %vm52, %v50, %v51
    %v54 = vrot.slane %v53, 2
    %vm55 = vcmp.lt.s32.totalorder %v53, %v54
    %v56 = vsel %vm55, %v53, %v54
    %v57 = vrot.slane %v56, 1
    %vm58 = vcmp.lt.s32.totalorder %v56, %v57
    %v59 = vsel %vm58, %v56, %v57
    %v60 = vsub.f32 %v29, %v30
    %v61 = vmul.f32 %v60, 1.442695
    %v62 = vpow.pop %v61
    %v63 = vrcp.pop %v45
    %v64 = vmul.f32 %v62, %v63
    %v67 = vrot.slane %v64, 7
    %vm69 = vcmask 1040384
    %v70 = vsel %vm69, %v67, %v59
    %vm71 = vcmask 123904
    %72 = vst.msk [vmem:[#allocation5] sm:$0x3] %vm71, %v70
    // Predicated region
    $region10: #{tpu_custom_call.1} parent=1 // pred_check
      _
    $region11: #{tpu_custom_call.1} parent=1 // pred_check_branch
      %74 = sbr.rel (0) target = $region13
    $region12: #{tpu_custom_call.1} parent=1 // pred_region
      %s76 = ssub.s32 32, 32
      %77 = vsyncadd [#allocation4], %s76
      %s79 = sshll.u32 [#allocation5], 4
      %s80 = int_to_ptr.vmem [resolvable:$true] %s79
      %82 = dma.vmem_to_hbm [thread:$0]  %s80, 32, %s1, [#allocation4]
    $region13: #{tpu_custom_call.1} parent=1 // pred_fallthru
      _
    // Predicated region
    $region14: #{tpu_custom_call.1} parent=1 // pred_check
      _
    $region15: #{tpu_custom_call.1} parent=1 // pred_check_branch
      %84 = sbr.rel (0) target = $region17
    $region16: #{tpu_custom_call.1} parent=1 // pred_region
      %85 = dma.done [#allocation4], 32
    $region17: #{tpu_custom_call.1} parent=1 // pred_fallthru
      _
    %86 = vsyncpa [#allocation3], 1
    %87 = vsyncpa [#allocation4], 1

</llo_original>
